<compile_context>
chip_gen: v7x
topology: tpu7x:2x2x1
jax: 0.10.0
libtpu: 0.0.40
codegen_flags: <defaults>
</compile_context>

<pallas_src>
import functools

import jax
import jax.numpy as jnp
import numpy as np
from jax import lax
from jax.experimental import pallas as pl
from jax.experimental.pallas import tpu as pltpu


def rmsnorm_kernel(x_ref, w_ref, o_ref, *, eps, d_real):
    """One grid step: RMS-normalize a (block_rows, D) tile of rows."""
    x = x_ref[...].astype(jnp.float32)                       # [block_rows, D]
    ms = jnp.sum(x * x, axis=-1, keepdims=True) * (1.0 / d_real)
    y = x * lax.rsqrt(ms + eps) * w_ref[...].astype(jnp.float32)   # [1, D] broadcasts
    o_ref[...] = y.astype(o_ref.dtype)


def _choose_block_rows(total_rows):
    """Largest sublane-aligned row block that divides total_rows, preferring >=2 grid steps
    (so v7x's two TensorCores both get work under 'parallel' semantics)."""
    for cand in (1024, 512, 256, 128, 64, 32, 16, 8):
        if total_rows % cand == 0 and total_rows // cand >= 2:
            return cand
    for cand in (1024, 512, 256, 128, 64, 32, 16, 8):
        if total_rows % cand == 0:
            return cand
    return total_rows  # tiny inputs: single full block (block dim == array dim is legal)


def rmsnorm_prepare(weight):
    """One-time parameter prep (hoisted out of the forward path, per review)."""
    return jnp.asarray(weight, jnp.float32).reshape(1, -1)    # [1, D]


def rmsnorm_forward(x, w_row, *, eps=1e-5):
    orig_shape = x.shape
    D = orig_shape[-1]
    R = int(np.prod(orig_shape[:-1]))
    x2 = x.reshape(R, D)                                      # row-major: metadata-only reshape

    block_rows = _choose_block_rows(R)
    grid = (R // block_rows,)

    # VMEM budget from the real footprint: double-buffered input + output tiles, the weight
    # row, plus headroom for compiler scratch. Never blanket-request a whole TC's VMEM.
    tile_bytes = block_rows * D * x2.dtype.itemsize
    vmem_limit = max(4 * 1024 * 1024, 4 * tile_bytes + 2 * D * 4 + (1 << 20))
    vmem_limit = min(vmem_limit, 32 * 1024 * 1024)

    kernel = functools.partial(rmsnorm_kernel, eps=eps, d_real=D)
    x_spec = pl.BlockSpec((block_rows, D), lambda i: (i, 0))
    o_spec = pl.BlockSpec((block_rows, D), lambda i: (i, 0))
    params = pltpu.CompilerParams(
        dimension_semantics=("parallel",),
        vmem_limit_bytes=vmem_limit,
    )

    def run(weight_spec):
        return pl.pallas_call(
            kernel,
            out_shape=jax.ShapeDtypeStruct((R, D), x.dtype),
            grid=grid,
            in_specs=[x_spec, weight_spec],
            out_specs=o_spec,
            compiler_params=params,
        )(x2, w_row)

    try:
        # Constant index_map + single buffer: the weight is grid-resident, never re-fetched.
        w_spec = pl.BlockSpec((1, D), lambda i: (0, 0), pipeline_mode=pl.Buffered(1))
        out2 = run(w_spec)
    except Exception:
        # Older JAX without pipeline_mode / Buffered(1): default double-buffered weight
        # (negligible: the weight is a single D-float row).
        out2 = run(pl.BlockSpec((1, D), lambda i: (0, 0)))

    return out2.reshape(orig_shape)


def reference(x, weight, eps=1e-5):
    """Pure-JAX f32 re-implementation of the PyTorch RMSNorm.forward (for verification)."""
    return x * lax.rsqrt(jnp.mean(x * x, axis=-1, keepdims=True) + eps) * weight


if __name__ == "__main__":
    d_model = 8                                                # matches the spec's d_model
    B, L = 2, 8

    key = jax.random.PRNGKey(0)
    kx, kw = jax.random.split(key)
    x = jax.random.normal(kx, (B, L, d_model), dtype=jnp.float32)
    # Module default init is ones; use a perturbed weight so the scale multiply is exercised.
    weight = (jnp.ones((d_model,), jnp.float32)
              + 0.1 * jax.random.normal(kw, (d_model,), dtype=jnp.float32))

    w_row = rmsnorm_prepare(weight)                            # hoisted one-time prep

    out = jax.block_until_ready(rmsnorm_forward(x, w_row))
    ref = reference(x, weight)
    np.testing.assert_allclose(np.asarray(out), np.asarray(ref), rtol=1e-5, atol=1e-5)

    # Second, larger shape: exercises a multi-step "parallel" grid (R=256 -> 2 steps of 128 rows).
    x_big = jax.random.normal(jax.random.PRNGKey(1), (4, 64, d_model), dtype=jnp.float32)
    out_big = jax.block_until_ready(rmsnorm_forward(x_big, w_row))
    ref_big = reference(x_big, weight)
    np.testing.assert_allclose(np.asarray(out_big), np.asarray(ref_big), rtol=1e-5, atol=1e-5)

    print("KERNEL_OK")
</pallas_src>

<mosaic_0001>
module attributes {stable_mosaic.version = 11 : i64} {
  func.func @rmsnorm_kernel(%arg0: i32, %arg1: memref<8x8xf32, #tpu.memory_space<vmem>>, %arg2: memref<1x8xf32, #tpu.memory_space<vmem>>, %arg3: memref<8x8xf32, #tpu.memory_space<vmem>>) attributes {dimension_semantics = [#tpu.dimension_semantics<parallel>], iteration_bounds = array<i64: 2>, scalar_prefetch = 0 : i64, scratch_operands = 0 : i64, tpu.core_type = #tpu.core_type<tc>, window_params = [{transform_indices = @transform_0, window_bounds = array<i64: 8, 8>}, {pipeline_mode = #tpu.pipeline_mode<synchronous>, transform_indices = @transform_1, window_bounds = array<i64: 1, 8>}, {transform_indices = @transform_2, window_bounds = array<i64: 8, 8>}]} {
    %c0 = arith.constant 0 : index
    %c0_0 = arith.constant 0 : index
    %0 = vector.load %arg1[%c0, %c0_0] : memref<8x8xf32, #tpu.memory_space<vmem>>, vector<8x8xf32>
    %1 = arith.mulf %0, %0 : vector<8x8xf32>
    %cst = arith.constant dense<0.000000e+00> : vector<8xf32>
    %2 = vector.multi_reduction <add>, %1, %cst [1] : vector<8x8xf32> to vector<8xf32>
    %3 = vector.shape_cast %2 : vector<8xf32> to vector<8x1xf32>
    %cst_1 = arith.constant 1.250000e-01 : f32
    %4 = vector.broadcast %cst_1 : f32 to vector<8x1xf32>
    %5 = arith.mulf %3, %4 : vector<8x1xf32>
    %cst_2 = arith.constant 9.99999974E-6 : f32
    %6 = vector.broadcast %cst_2 : f32 to vector<8x1xf32>
    %7 = arith.addf %5, %6 : vector<8x1xf32>
    %8 = math.rsqrt %7 : vector<8x1xf32>
    %9 = vector.broadcast %8 : vector<8x1xf32> to vector<8x8xf32>
    %10 = arith.mulf %0, %9 : vector<8x8xf32>
    %c0_3 = arith.constant 0 : index
    %c0_4 = arith.constant 0 : index
    %11 = vector.load %arg2[%c0_3, %c0_4] : memref<1x8xf32, #tpu.memory_space<vmem>>, vector<1x8xf32>
    %12 = vector.broadcast %11 : vector<1x8xf32> to vector<8x8xf32>
    %13 = arith.mulf %10, %12 : vector<8x8xf32>
    %c0_5 = arith.constant 0 : index
    %c0_6 = arith.constant 0 : index
    %14 = vector.load %arg3[%c0_5, %c0_6] : memref<8x8xf32, #tpu.memory_space<vmem>>, vector<8x8xf32>
    tpu.vector_store %arg3[%c0_5, %c0_6], %13 {strides = array<i32>} : memref<8x8xf32, #tpu.memory_space<vmem>>, vector<8x8xf32>,
    return
  }
  func.func @transform_0(%arg0: i32) -> (i32, i32) {
    %c0_i32 = arith.constant 0 : i32
    %c0_i32_0 = arith.constant 0 : i32
    return %arg0, %c0_i32 : i32, i32
  }
  func.func @transform_1(%arg0: i32) -> (i32, i32) {
    %c0_i32 = arith.constant 0 : i32
    %c0_i32_0 = arith.constant 0 : i32
    %c0_i32_1 = arith.constant 0 : i32
    return %c0_i32, %c0_i32_0 : i32, i32
  }
  func.func @transform_2(%arg0: i32) -> (i32, i32) {
    %c0_i32 = arith.constant 0 : i32
    %c0_i32_0 = arith.constant 0 : i32
    return %arg0, %c0_i32 : i32, i32
  }
}

module attributes {stable_mosaic.version = 11 : i64} {
  func.func @rmsnorm_kernel(%arg0: i32, %arg1: memref<8x8xf32, #tpu.memory_space<vmem>>, %arg2: memref<1x8xf32, #tpu.memory_space<vmem>>, %arg3: memref<8x8xf32, #tpu.memory_space<vmem>>) attributes {dimension_semantics = [#tpu.dimension_semantics<parallel>], iteration_bounds = array<i64: 2>, scalar_prefetch = 0 : i64, scratch_operands = 0 : i64, tpu.core_type = #tpu.core_type<tc>, window_params = [{transform_indices = @transform_0, window_bounds = array<i64: 8, 8>}, {pipeline_mode = #tpu.pipeline_mode<synchronous>, transform_indices = @transform_1, window_bounds = array<i64: 1, 8>}, {transform_indices = @transform_2, window_bounds = array<i64: 8, 8>}]} {
    %c0 = arith.constant 0 : index
    %c0_0 = arith.constant 0 : index
    %0 = vector.load %arg1[%c0, %c0_0] : memref<8x8xf32, #tpu.memory_space<vmem>>, vector<8x8xf32>
    %1 = arith.mulf %0, %0 : vector<8x8xf32>
    %cst = arith.constant dense<0.000000e+00> : vector<8xf32>
    %2 = vector.multi_reduction <add>, %1, %cst [1] : vector<8x8xf32> to vector<8xf32>
    %3 = vector.shape_cast %2 : vector<8xf32> to vector<8x1xf32>
    %cst_1 = arith.constant 1.250000e-01 : f32
    %4 = vector.broadcast %cst_1 : f32 to vector<8x1xf32>
    %5 = arith.mulf %3, %4 : vector<8x1xf32>
    %cst_2 = arith.constant 9.99999974E-6 : f32
    %6 = vector.broadcast %cst_2 : f32 to vector<8x1xf32>
    %7 = arith.addf %5, %6 : vector<8x1xf32>
    %8 = math.rsqrt %7 : vector<8x1xf32>
    %9 = vector.broadcast %8 : vector<8x1xf32> to vector<8x8xf32>
    %10 = arith.mulf %0, %9 : vector<8x8xf32>
    %c0_3 = arith.constant 0 : index
    %c0_4 = arith.constant 0 : index
    %11 = vector.load %arg2[%c0_3, %c0_4] : memref<1x8xf32, #tpu.memory_space<vmem>>, vector<1x8xf32>
    %12 = vector.broadcast %11 : vector<1x8xf32> to vector<8x8xf32>
    %13 = arith.mulf %10, %12 : vector<8x8xf32>
    %c0_5 = arith.constant 0 : index
    %c0_6 = arith.constant 0 : index
    %14 = vector.load %arg3[%c0_5, %c0_6] : memref<8x8xf32, #tpu.memory_space<vmem>>, vector<8x8xf32>
    tpu.vector_store %arg3[%c0_5, %c0_6], %13 {strides = array<i32>} : memref<8x8xf32, #tpu.memory_space<vmem>>, vector<8x8xf32>,
    return
  }
  func.func @transform_0(%arg0: i32) -> (i32, i32) {
    %c0_i32 = arith.constant 0 : i32
    %c0_i32_0 = arith.constant 0 : i32
    return %arg0, %c0_i32 : i32, i32
  }
  func.func @transform_1(%arg0: i32) -> (i32, i32) {
    %c0_i32 = arith.constant 0 : i32
    %c0_i32_0 = arith.constant 0 : i32
    %c0_i32_1 = arith.constant 0 : i32
    return %c0_i32, %c0_i32_0 : i32, i32
  }
  func.func @transform_2(%arg0: i32) -> (i32, i32) {
    %c0_i32 = arith.constant 0 : i32
    %c0_i32_0 = arith.constant 0 : i32
    return %arg0, %c0_i32 : i32, i32
  }
}

</mosaic_0001>

<llo_original>
// kernel: tpu_custom_call.1
$region0: #{tpu_custom_call.1}
  #allocation0 [shape = 'u32[]', space=smem, size = 0x4, offset = 0x4, fixed_abs, tag = 'smem constant byte address 0x4 - core index']
  #allocation1 [shape = 'u32[144,128]{1,0:T(1,128)}', space=vmem, size = 0x12000, scoped, tag = 'internal scratch']
  %s0 = inlined_call_operand.vmem [shape: f32[16,8], index: 0, kind: input, shape index: {}]
  %s1 = inlined_call_operand.vmem [shape: f32[1,8], index: 1, kind: input, shape index: {}]
  %s2 = inlined_call_operand.vmem [shape: f32[16,8], index: 2, kind: output, shape index: {}]
  %s3 = sld [smem:[#allocation0]]
  $region41: #{tpu_custom_call.1} parent=0
    _
  %s5 = ssub.s32 1, %s3
  %s6 = scalar_select 0, %s5, %s3
  loop: start=0, step=1, limit=4
  $region2: #{tpu_custom_call.1} parent=0 // loop_pre_header
    _
  $region3: #{tpu_custom_call.1} parent=0 // loop_header
    %s8 = sphi 0, %s12
    %p9 = scmp.ge.s32.totalorder %s8, 4
    %s18 = sphi 0, %s20
    %s21 = sphi 0, %s18
    %s22 = sphi 0, %s21
    %s38 = sphi 0, %s22
    %s42 = sphi 0, %s42
    %s44 = sphi 0, %s42
    %s45 = sphi 0, %s44
    %s59 = sphi 0, %s45
    %s65 = sphi 0, %s67
    %s68 = sphi 0, %s65
    %s69 = sphi 0, %s68
    %s85 = sphi 0, %s69
  $region4: #{tpu_custom_call.1} parent=0 // loop_header_branch
    %11 = sbr.rel (%p9) target = $region8
  $region5: #{tpu_custom_call.1} parent=0 // loop_body
    %s13 = ssub.s32 %s8, 1
    %s14 = ssub.s32 %s8, 2
    %s15 = sadd.s32 %s8, 1
    %s16 = ssub.s32 %s8, %s15
    %p17 = scmp.eq.s32.totalorder %s16, 0
    %s19 = sadd.s32 %s18, 1
    %s20 = scalar_select %p17, %s18, %s19
    %p23 = pneg %p17
    %p24 = scmp.eq.s32.totalorder %s8, 1
    %p25 = por %p23, %p24
    %p26 = scmp.ne.s32.totalorder %s18, %s21
    %p27 = scmp.eq.s32.totalorder %s8, 0
    %p28 = por %p26, %p27
    %p29 = scmp.ne.s32.totalorder %s18, %s21
    %p30 = scmp.eq.s32.totalorder %s13, 1
    %p31 = por %p29, %p30
    %p32 = scmp.ne.s32.totalorder %s21, %s22
    %p33 = scmp.eq.s32.totalorder %s13, 0
    %p34 = por %p32, %p33
    %p35 = scmp.ne.s32.totalorder %s21, %s22
    %p36 = scmp.eq.s32.totalorder %s14, 1
    %p37 = por %p35, %p36
    %p39 = scmp.ne.s32.totalorder %s22, %s38
    %p40 = scmp.eq.s32.totalorder %s14, 0
    %p41 = por %p39, %p40
    %s43 = sadd.s32 %s42, 1
    %p46 = scmp.eq.s32.totalorder %s8, 1
    %p47 = scmp.ne.s32.totalorder %s42, %s44
    %p48 = scmp.eq.s32.totalorder %s8, 0
    %p49 = por %p47, %p48
    %p50 = scmp.ne.s32.totalorder %s42, %s44
    %p51 = scmp.eq.s32.totalorder %s13, 1
    %p52 = por %p50, %p51
    %p53 = scmp.ne.s32.totalorder %s44, %s45
    %p54 = scmp.eq.s32.totalorder %s13, 0
    %p55 = por %p53, %p54
    %p56 = scmp.ne.s32.totalorder %s44, %s45
    %p57 = scmp.eq.s32.totalorder %s14, 1
    %p58 = por %p56, %p57
    %p60 = scmp.ne.s32.totalorder %s45, %s59
    %p61 = scmp.eq.s32.totalorder %s14, 0
    %p62 = por %p60, %p61
    %s63 = ssub.s32 %s8, %s15
    %p64 = scmp.eq.s32.totalorder %s63, 0
    %s66 = sadd.s32 %s65, 1
    %s67 = scalar_select %p64, %s65, %s66
    %p70 = pneg %p64
    %p71 = scmp.eq.s32.totalorder %s8, 1
    %p72 = por %p70, %p71
    %p73 = scmp.ne.s32.totalorder %s65, %s68
    %p74 = scmp.eq.s32.totalorder %s8, 0
    %p75 = por %p73, %p74
    %p76 = scmp.ne.s32.totalorder %s65, %s68
    %p77 = scmp.eq.s32.totalorder %s13, 1
    %p78 = por %p76, %p77
    %p79 = scmp.ne.s32.totalorder %s68, %s69
    %p80 = scmp.eq.s32.totalorder %s13, 0
    %p81 = por %p79, %p80
    %p82 = scmp.ne.s32.totalorder %s68, %s69
    %p83 = scmp.eq.s32.totalorder %s14, 1
    %p84 = por %p82, %p83
    %p86 = scmp.ne.s32.totalorder %s69, %s85
    %p87 = scmp.eq.s32.totalorder %s14, 0
    %p88 = por %p86, %p87
    %p89 = scmp.le.s32.totalorder 1, %s8
    %p90 = scmp.lt.s32.totalorder %s8, 3
    %p91 = pnand %p89, %p90
    %p92 = pneg %p91
    // Predicated region
    $region9: #{tpu_custom_call.1} parent=5 // pred_check
      _
    $region10: #{tpu_custom_call.1} parent=5 // pred_check_branch
      %94 = sbr.rel (%p91) target = $region12
    $region11: #{tpu_custom_call.1} parent=5 // pred_region
      %s95 = ssub.s32 %s8, 1
      // Predicated region
      $region13: #{tpu_custom_call.1} parent=11 // pred_check
        %p96 = pneg %p55
      $region14: #{tpu_custom_call.1} parent=11 // pred_check_branch
        %98 = sbr.rel (%p96) target = $region16
      $region15: #{tpu_custom_call.1} parent=11 // pred_region
        _
      $region16: #{tpu_custom_call.1} parent=11 // pred_fallthru
        _
    $region12: #{tpu_custom_call.1} parent=5 // pred_fallthru
      _
    %p99 = scmp.lt.s32.totalorder %s8, 2
    // Predicated region
    $region17: #{tpu_custom_call.1} parent=5 // pred_check
      %p100 = pneg %p99
    $region18: #{tpu_custom_call.1} parent=5 // pred_check_branch
      %102 = sbr.rel (%p100) target = $region20
    $region19: #{tpu_custom_call.1} parent=5 // pred_region
      // Predicated region
      $region21: #{tpu_custom_call.1} parent=19 // pred_check
        %p103 = pneg %p28
      $region22: #{tpu_custom_call.1} parent=19 // pred_check_branch
        %105 = sbr.rel (%p103) target = $region24
      $region23: #{tpu_custom_call.1} parent=19 // pred_region
        %p106 = scmp.lt.s32.totalorder %s8, 1
        %s107 = scalar_select %p106, %s8, 1
        %s108 = smul.addr %s107, 8
        %s109 = scalar_lea.vmem %s0, %s108
      $region24: #{tpu_custom_call.1} parent=19 // pred_fallthru
        _
    $region20: #{tpu_custom_call.1} parent=5 // pred_fallthru
      _
    %p110 = scmp.le.s32.totalorder 1, %s8
    %p111 = scmp.lt.s32.totalorder %s8, 3
    %p112 = pnand %p110, %p111
    %p113 = pneg %p112
    // Predicated region
    $region25: #{tpu_custom_call.1} parent=5 // pred_check
      _
    $region26: #{tpu_custom_call.1} parent=5 // pred_check_branch
      %115 = sbr.rel (%p112) target = $region28
    $region27: #{tpu_custom_call.1} parent=5 // pred_region
      %s116 = ssub.s32 %s8, 1
      %p117 = scmp.lt.s32.totalorder %s13, 1
      %s118 = scalar_select %p117, %s13, 1
      %s119 = smul.addr %s118, 8
      %s120 = scalar_lea.vmem %s0, %s119
      %p121 = pneg %p34
      %p122 = pneg %p31
      %p123 = pneg %p55
      %p124 = pneg %p52
      %p125 = pneg %p81
      %p126 = pneg %p78
      %p127 = scmp.lt.s32.totalorder %s13, 1
      %s128 = scalar_select %p127, %s13, 1
      %s129 = smul.addr %s128, 8
      %s130 = scalar_lea.vmem %s2, %s129
      %p131 = scmp.lt.s32.totalorder %s13, 1
      %s132 = scalar_select %p131, %s13, 1
      %s133 = smul.addr %s132, 8
      %s134 = scalar_lea.vmem %s0, %s133
      %p135 = scmp.lt.s32.totalorder %s13, 1
      %s136 = scalar_select %p135, %s13, 1
      %s137 = smul.addr %s136, 8
      %s138 = scalar_lea.vmem %s2, %s137
      %v139 = vld [vmem:[%s134] sm:$0xff]
      %v140 = vmul.f32 %v139, %v139
      %vm141 = vcmask 64512
      %v142 = vsel %vm141, %v140, 0.0
      %143 = vadd.xlane.f32.xlu0 %v142
      %v144 = vpop.xlane.xlu0 %143
      %v145 = vmul.f32 %v144, 0.125
      %v146 = vadd.f32 %v145, 1e-05
      %v147 = vrsqrt.pop %v146
      %v148 = vmul.f32 %v139, %v147
      %v149 = vld [vmem:[%s1] sm:$0x1]
      %v151 = vlaneseq
      %v152 = vshrl.u32 %v151, 7
      %v153 = vsub.s32 0, %v152
      %v154 = vrot.slane %v149, %v153
      %v156 = vmul.f32 %v148, %v154
      %157 = vst.msk [vmem:[%s138] sm:$0xff] %vm141, %v156
      %p158 = scmp.lt.s32.totalorder %s13, 1
      %s159 = scalar_select %p158, %s13, 1
      %s160 = smul.addr %s159, 8
      %s161 = scalar_lea.vmem %s2, %s160
      // Predicated region
      $region29: #{tpu_custom_call.1} parent=27 // pred_check
        %p162 = pneg %p78
      $region30: #{tpu_custom_call.1} parent=27 // pred_check_branch
        %164 = sbr.rel (%p162) target = $region32
      $region31: #{tpu_custom_call.1} parent=27 // pred_region
        _
      $region32: #{tpu_custom_call.1} parent=27 // pred_fallthru
        _
    $region28: #{tpu_custom_call.1} parent=5 // pred_fallthru
      _
    %p165 = scmp.le.s32.totalorder 2, %s8
    // Predicated region
    $region33: #{tpu_custom_call.1} parent=5 // pred_check
      %p166 = pneg %p165
    $region34: #{tpu_custom_call.1} parent=5 // pred_check_branch
      %168 = sbr.rel (%p166) target = $region36
    $region35: #{tpu_custom_call.1} parent=5 // pred_region
      %s169 = ssub.s32 %s8, 2
      // Predicated region
      $region37: #{tpu_custom_call.1} parent=35 // pred_check
        %p170 = pneg %p84
      $region38: #{tpu_custom_call.1} parent=35 // pred_check_branch
        %172 = sbr.rel (%p170) target = $region40
      $region39: #{tpu_custom_call.1} parent=35 // pred_region
        %p173 = scmp.lt.s32.totalorder %s14, 1
        %s174 = scalar_select %p173, %s14, 1
        %s175 = smul.addr %s174, 8
        %s176 = scalar_lea.vmem %s2, %s175
      $region40: #{tpu_custom_call.1} parent=35 // pred_fallthru
        _
    $region36: #{tpu_custom_call.1} parent=5 // pred_fallthru
      _
  $region6: #{tpu_custom_call.1} parent=0 // loop_footer
    %s12 = sadd.s32 1, %s8
  $region7: #{tpu_custom_call.1} parent=0 // loop_footer_branch
    %7 = sbr.rel target = $region3
  $region8: #{tpu_custom_call.1} parent=0 // loop_exit
    _

// kernel: tpu_custom_call.1
$region0: #{tpu_custom_call.1}
  #allocation0 [shape = 'u32[]', space=smem, size = 0x4, offset = 0x4, fixed_abs, tag = 'smem constant byte address 0x4 - core index']
  #allocation1 [shape = 'u32[144,128]{1,0:T(1,128)}', space=vmem, size = 0x12000, scoped, tag = 'internal scratch']
  %s0 = inlined_call_operand.vmem [shape: f32[16,8], index: 0, kind: input, shape index: {}]
  %s1 = inlined_call_operand.vmem [shape: f32[1,8], index: 1, kind: input, shape index: {}]
  %s2 = inlined_call_operand.vmem [shape: f32[16,8], index: 2, kind: output, shape index: {}]
  %s3 = sld [smem:[#allocation0]]
  $region41: #{tpu_custom_call.1} parent=0
    _
  %s5 = ssub.s32 1, %s3
  %s6 = scalar_select 0, %s5, %s3
  loop: start=0, step=1, limit=4
  $region2: #{tpu_custom_call.1} parent=0 // loop_pre_header
    _
  $region3: #{tpu_custom_call.1} parent=0 // loop_header
    %s8 = sphi 0, %s12
    %p9 = scmp.ge.s32.totalorder %s8, 4
    %s18 = sphi 0, %s20
    %s21 = sphi 0, %s18
    %s22 = sphi 0, %s21
    %s38 = sphi 0, %s22
    %s42 = sphi 0, %s42
    %s44 = sphi 0, %s42
    %s45 = sphi 0, %s44
    %s59 = sphi 0, %s45
    %s65 = sphi 0, %s67
    %s68 = sphi 0, %s65
    %s69 = sphi 0, %s68
    %s85 = sphi 0, %s69
  $region4: #{tpu_custom_call.1} parent=0 // loop_header_branch
    %11 = sbr.rel (%p9) target = $region8
  $region5: #{tpu_custom_call.1} parent=0 // loop_body
    %s13 = ssub.s32 %s8, 1
    %s14 = ssub.s32 %s8, 2
    %s15 = sadd.s32 %s8, 1
    %s16 = ssub.s32 %s8, %s15
    %p17 = scmp.eq.s32.totalorder %s16, 0
    %s19 = sadd.s32 %s18, 1
    %s20 = scalar_select %p17, %s18, %s19
    %p23 = pneg %p17
    %p24 = scmp.eq.s32.totalorder %s8, 1
    %p25 = por %p23, %p24
    %p26 = scmp.ne.s32.totalorder %s18, %s21
    %p27 = scmp.eq.s32.totalorder %s8, 0
    %p28 = por %p26, %p27
    %p29 = scmp.ne.s32.totalorder %s18, %s21
    %p30 = scmp.eq.s32.totalorder %s13, 1
    %p31 = por %p29, %p30
    %p32 = scmp.ne.s32.totalorder %s21, %s22
    %p33 = scmp.eq.s32.totalorder %s13, 0
    %p34 = por %p32, %p33
    %p35 = scmp.ne.s32.totalorder %s21, %s22
    %p36 = scmp.eq.s32.totalorder %s14, 1
    %p37 = por %p35, %p36
    %p39 = scmp.ne.s32.totalorder %s22, %s38
    %p40 = scmp.eq.s32.totalorder %s14, 0
    %p41 = por %p39, %p40
    %s43 = sadd.s32 %s42, 1
    %p46 = scmp.eq.s32.totalorder %s8, 1
    %p47 = scmp.ne.s32.totalorder %s42, %s44
    %p48 = scmp.eq.s32.totalorder %s8, 0
    %p49 = por %p47, %p48
    %p50 = scmp.ne.s32.totalorder %s42, %s44
    %p51 = scmp.eq.s32.totalorder %s13, 1
    %p52 = por %p50, %p51
    %p53 = scmp.ne.s32.totalorder %s44, %s45
    %p54 = scmp.eq.s32.totalorder %s13, 0
    %p55 = por %p53, %p54
    %p56 = scmp.ne.s32.totalorder %s44, %s45
    %p57 = scmp.eq.s32.totalorder %s14, 1
    %p58 = por %p56, %p57
    %p60 = scmp.ne.s32.totalorder %s45, %s59
    %p61 = scmp.eq.s32.totalorder %s14, 0
    %p62 = por %p60, %p61
    %s63 = ssub.s32 %s8, %s15
    %p64 = scmp.eq.s32.totalorder %s63, 0
    %s66 = sadd.s32 %s65, 1
    %s67 = scalar_select %p64, %s65, %s66
    %p70 = pneg %p64
    %p71 = scmp.eq.s32.totalorder %s8, 1
    %p72 = por %p70, %p71
    %p73 = scmp.ne.s32.totalorder %s65, %s68
    %p74 = scmp.eq.s32.totalorder %s8, 0
    %p75 = por %p73, %p74
    %p76 = scmp.ne.s32.totalorder %s65, %s68
    %p77 = scmp.eq.s32.totalorder %s13, 1
    %p78 = por %p76, %p77
    %p79 = scmp.ne.s32.totalorder %s68, %s69
    %p80 = scmp.eq.s32.totalorder %s13, 0
    %p81 = por %p79, %p80
    %p82 = scmp.ne.s32.totalorder %s68, %s69
    %p83 = scmp.eq.s32.totalorder %s14, 1
    %p84 = por %p82, %p83
    %p86 = scmp.ne.s32.totalorder %s69, %s85
    %p87 = scmp.eq.s32.totalorder %s14, 0
    %p88 = por %p86, %p87
    %p89 = scmp.le.s32.totalorder 1, %s8
    %p90 = scmp.lt.s32.totalorder %s8, 3
    %p91 = pnand %p89, %p90
    %p92 = pneg %p91
    // Predicated region
    $region9: #{tpu_custom_call.1} parent=5 // pred_check
      _
    $region10: #{tpu_custom_call.1} parent=5 // pred_check_branch
      %94 = sbr.rel (%p91) target = $region12
    $region11: #{tpu_custom_call.1} parent=5 // pred_region
      %s95 = ssub.s32 %s8, 1
      // Predicated region
      $region13: #{tpu_custom_call.1} parent=11 // pred_check
        %p96 = pneg %p55
      $region14: #{tpu_custom_call.1} parent=11 // pred_check_branch
        %98 = sbr.rel (%p96) target = $region16
      $region15: #{tpu_custom_call.1} parent=11 // pred_region
        _
      $region16: #{tpu_custom_call.1} parent=11 // pred_fallthru
        _
    $region12: #{tpu_custom_call.1} parent=5 // pred_fallthru
      _
    %p99 = scmp.lt.s32.totalorder %s8, 2
    // Predicated region
    $region17: #{tpu_custom_call.1} parent=5 // pred_check
      %p100 = pneg %p99
    $region18: #{tpu_custom_call.1} parent=5 // pred_check_branch
      %102 = sbr.rel (%p100) target = $region20
    $region19: #{tpu_custom_call.1} parent=5 // pred_region
      // Predicated region
      $region21: #{tpu_custom_call.1} parent=19 // pred_check
        %p103 = pneg %p28
      $region22: #{tpu_custom_call.1} parent=19 // pred_check_branch
        %105 = sbr.rel (%p103) target = $region24
      $region23: #{tpu_custom_call.1} parent=19 // pred_region
        %p106 = scmp.lt.s32.totalorder %s8, 1
        %s107 = scalar_select %p106, %s8, 1
        %s108 = smul.addr %s107, 8
        %s109 = scalar_lea.vmem %s0, %s108
      $region24: #{tpu_custom_call.1} parent=19 // pred_fallthru
        _
    $region20: #{tpu_custom_call.1} parent=5 // pred_fallthru
      _
    %p110 = scmp.le.s32.totalorder 1, %s8
    %p111 = scmp.lt.s32.totalorder %s8, 3
    %p112 = pnand %p110, %p111
    %p113 = pneg %p112
    // Predicated region
    $region25: #{tpu_custom_call.1} parent=5 // pred_check
      _
    $region26: #{tpu_custom_call.1} parent=5 // pred_check_branch
      %115 = sbr.rel (%p112) target = $region28
    $region27: #{tpu_custom_call.1} parent=5 // pred_region
      %s116 = ssub.s32 %s8, 1
      %p117 = scmp.lt.s32.totalorder %s13, 1
      %s118 = scalar_select %p117, %s13, 1
      %s119 = smul.addr %s118, 8
      %s120 = scalar_lea.vmem %s0, %s119
      %p121 = pneg %p34
      %p122 = pneg %p31
      %p123 = pneg %p55
      %p124 = pneg %p52
      %p125 = pneg %p81
      %p126 = pneg %p78
      %p127 = scmp.lt.s32.totalorder %s13, 1
      %s128 = scalar_select %p127, %s13, 1
      %s129 = smul.addr %s128, 8
      %s130 = scalar_lea.vmem %s2, %s129
      %p131 = scmp.lt.s32.totalorder %s13, 1
      %s132 = scalar_select %p131, %s13, 1
      %s133 = smul.addr %s132, 8
      %s134 = scalar_lea.vmem %s0, %s133
      %p135 = scmp.lt.s32.totalorder %s13, 1
      %s136 = scalar_select %p135, %s13, 1
      %s137 = smul.addr %s136, 8
      %s138 = scalar_lea.vmem %s2, %s137
      %v139 = vld [vmem:[%s134] sm:$0xff]
      %v140 = vmul.f32 %v139, %v139
      %vm141 = vcmask 64512
      %v142 = vsel %vm141, %v140, 0.0
      %143 = vadd.xlane.f32.xlu0 %v142
      %v144 = vpop.xlane.xlu0 %143
      %v145 = vmul.f32 %v144, 0.125
      %v146 = vadd.f32 %v145, 1e-05
      %v147 = vrsqrt.pop %v146
      %v148 = vmul.f32 %v139, %v147
      %v149 = vld [vmem:[%s1] sm:$0x1]
      %v151 = vlaneseq
      %v152 = vshrl.u32 %v151, 7
      %v153 = vsub.s32 0, %v152
      %v154 = vrot.slane %v149, %v153
      %v156 = vmul.f32 %v148, %v154
      %157 = vst.msk [vmem:[%s138] sm:$0xff] %vm141, %v156
      %p158 = scmp.lt.s32.totalorder %s13, 1
      %s159 = scalar_select %p158, %s13, 1
      %s160 = smul.addr %s159, 8
      %s161 = scalar_lea.vmem %s2, %s160
      // Predicated region
      $region29: #{tpu_custom_call.1} parent=27 // pred_check
        %p162 = pneg %p78
      $region30: #{tpu_custom_call.1} parent=27 // pred_check_branch
        %164 = sbr.rel (%p162) target = $region32
      $region31: #{tpu_custom_call.1} parent=27 // pred_region
        _
      $region32: #{tpu_custom_call.1} parent=27 // pred_fallthru
        _
    $region28: #{tpu_custom_call.1} parent=5 // pred_fallthru
      _
    %p165 = scmp.le.s32.totalorder 2, %s8
    // Predicated region
    $region33: #{tpu_custom_call.1} parent=5 // pred_check
      %p166 = pneg %p165
    $region34: #{tpu_custom_call.1} parent=5 // pred_check_branch
      %168 = sbr.rel (%p166) target = $region36
    $region35: #{tpu_custom_call.1} parent=5 // pred_region
      %s169 = ssub.s32 %s8, 2
      // Predicated region
      $region37: #{tpu_custom_call.1} parent=35 // pred_check
        %p170 = pneg %p84
      $region38: #{tpu_custom_call.1} parent=35 // pred_check_branch
        %172 = sbr.rel (%p170) target = $region40
      $region39: #{tpu_custom_call.1} parent=35 // pred_region
        %p173 = scmp.lt.s32.totalorder %s14, 1
        %s174 = scalar_select %p173, %s14, 1
        %s175 = smul.addr %s174, 8
        %s176 = scalar_lea.vmem %s2, %s175
      $region40: #{tpu_custom_call.1} parent=35 // pred_fallthru
        _
    $region36: #{tpu_custom_call.1} parent=5 // pred_fallthru
      _
  $region6: #{tpu_custom_call.1} parent=0 // loop_footer
    %s12 = sadd.s32 1, %s8
  $region7: #{tpu_custom_call.1} parent=0 // loop_footer_branch
    %7 = sbr.rel target = $region3
  $region8: #{tpu_custom_call.1} parent=0 // loop_exit
    _

</llo_original>
